<compile_context>
chip_gen: v7x
topology: tpu7x:2x2x1
jax: 0.10.0
libtpu: 0.0.40
codegen_flags: <defaults>
</compile_context>

<pallas_src>
import functools

import jax
import jax.numpy as jnp
from jax.experimental import pallas as pl
from jax.experimental.pallas import tpu as pltpu


def _dropout_kernel(seed_ref, x_ref, o_ref, *, threshold, scale, block_rows, cols):
    """Dropout on one lane-dense (block_rows, cols) tile.

    keep[i] = hash(global_index[i], seed) >= threshold, P(drop) = threshold/2^32.
    """
    i = pl.program_id(0)
    shape = x_ref.shape

    # Global linear index of every element in this tile.
    row = jax.lax.broadcasted_iota(jnp.int32, shape, 0).astype(jnp.uint32)
    col = jax.lax.broadcasted_iota(jnp.int32, shape, 1).astype(jnp.uint32)
    base = (i * block_rows).astype(jnp.uint32)
    idx = (base + row) * jnp.uint32(cols) + col

    # Counter-based PRNG: splitmix-style Weyl step, then murmur3 fmix32.
    h = (idx + seed_ref[0].astype(jnp.uint32)) * jnp.uint32(0x9E3779B1)
    h = h ^ (h >> 16)
    h = h * jnp.uint32(0x85EBCA6B)
    h = h ^ (h >> 13)
    h = h * jnp.uint32(0xC2B2AE35)
    h = h ^ (h >> 16)

    keep = h >= jnp.uint32(threshold)

    x = x_ref[...]
    # Native-dtype math (weak-typed Python float `scale` does not upcast bf16).
    o_ref[...] = jnp.where(keep, x * scale, jnp.zeros_like(x))


_TARGET_TILE_BYTES = 2 * 1024 * 1024  # ~2 MiB tiles: amortize grid overhead,
                                      # fits all generations' scoped VMEM with
                                      # default double-buffering.


def dropout(x, p: float = 0.0, *, seed: int = 0, training: bool = True):
    """Forward pass of the PyTorch Dropout module.

    Matches `nn.Dropout(p)` semantics: in training mode with p > 0, each
    element is zeroed with probability p and survivors are scaled by
    1 / (1 - p). In eval mode (or p == 0) it is the identity.
    """
    if (not training) or p <= 0.0:
        return x  # identity path, exactly as in the reference module
    assert p < 1.0, "p == 1.0 would zero everything; not supported here"

    orig_shape = x.shape
    n = x.size
    if n == 0:
        return x
    itemsize = jnp.dtype(x.dtype).itemsize

    # Lane-dense 2D slab [rows, cols]: pick the widest cols (multiple of 128)
    # that divides n so we avoid any pad / trailing-slice HBM copies.
    cols = None
    for c in (4096, 2048, 1024, 512, 256, 128):
        if n % c == 0:
            cols = c
            break
    pad = 0
    if cols is None:
        # Rare ragged fallback (n not a multiple of 128): pad + slice.
        cols = 128
        pad = (-n) % cols
    rows = (n + pad) // cols

    # Tile rows: whole array if it is small, otherwise ~2 MiB tiles with a
    # multiple-of-8 sublane count.  Uneven trailing blocks are handled by
    # Pallas (reads padded, OOB writes clipped), which is fine elementwise.
    max_block_rows = max(8, (_TARGET_TILE_BYTES // (cols * itemsize)) // 8 * 8)
    block_rows = rows if rows <= max_block_rows else max_block_rows
    grid = (pl.cdiv(rows, block_rows),)

    flat = x.reshape(-1)
    if pad:
        flat = jnp.pad(flat, (0, pad))
    x2d = flat.reshape(rows, cols)

    threshold = min(int(round(p * float(2 ** 32))), 2 ** 32 - 1)
    scale = 1.0 / (1.0 - p)
    seed_arr = jnp.array([seed], dtype=jnp.int32)

    kernel = functools.partial(
        _dropout_kernel,
        threshold=threshold, scale=scale, block_rows=block_rows, cols=cols)

    out = pl.pallas_call(
        kernel,
        out_shape=jax.ShapeDtypeStruct((rows, cols), x.dtype),
        grid=grid,
        in_specs=[
            pl.BlockSpec(memory_space=pltpu.MemorySpace.SMEM),    # seed scalar
            pl.BlockSpec((block_rows, cols), lambda i: (i, 0)),   # x tile
        ],
        out_specs=pl.BlockSpec((block_rows, cols), lambda i: (i, 0)),
        compiler_params=pltpu.CompilerParams(
            # Randomness is a pure hash of global indices, so every grid step
            # is independent -> parallel (lets v7x shard across both TCs).
            dimension_semantics=("parallel",),
        ),
    )(seed_arr, x2d)

    out = out.reshape(-1)
    if pad:
        out = out[:n]
    return out.reshape(orig_shape)


if __name__ == "__main__":
    key = jax.random.PRNGKey(0)
    x = jax.random.normal(key, (2, 4, 16, 16), dtype=jnp.float32)  # NCHW

    p = 0.3

    # Training mode with p > 0: dropout kernel runs.
    y_train = dropout(x, p, seed=0, training=True)
    y_train = jax.block_until_ready(y_train)

    # Eval mode: identity (mirrors the PyTorch module's `self.training` gate).
    y_eval = dropout(x, p, seed=0, training=False)
    y_eval = jax.block_until_ready(y_eval)

    # Sanity checks: eval is identity; train output is either 0 or x/(1-p).
    assert jnp.array_equal(y_eval, x)
    scale = 1.0 / (1.0 - p)
    is_zero = jnp.isclose(y_train, 0.0)
    is_scaled = jnp.isclose(y_train, x * scale, rtol=1e-5, atol=1e-6)
    assert bool(jnp.all(is_zero | is_scaled))
    # Drop rate should be roughly p on 2048 elements.
    drop_frac = float(jnp.mean(is_zero & ~jnp.isclose(x, 0.0)))
    assert abs(drop_frac - p) < 0.08, drop_frac

    print("KERNEL_OK")
</pallas_src>

<mosaic_0001>
module attributes {stable_mosaic.version = 11 : i64} {
  func.func @_dropout_kernel(%arg0: i32, %arg1: memref<1xi32, #tpu.memory_space<smem>>, %arg2: memref<1x2048xf32, #tpu.memory_space<vmem>>, %arg3: memref<1x2048xf32, #tpu.memory_space<vmem>>) attributes {dimension_semantics = [#tpu.dimension_semantics<parallel>], iteration_bounds = array<i64: 1>, scalar_prefetch = 0 : i64, scratch_operands = 0 : i64, tpu.core_type = #tpu.core_type<tc>, window_params = [{transform_indices = @transform_0, window_bounds = array<i64: 1>}, {transform_indices = @transform_1, window_bounds = array<i64: 1, 2048>}, {transform_indices = @transform_2, window_bounds = array<i64: 1, 2048>}]} {
    %0 = tpu.iota {dimensions = array<i32: 0>} : vector<1x2048xi32>
    %1 = tpu.iota {dimensions = array<i32: 1>} : vector<1x2048xi32>
    %c1_i32 = arith.constant 1 : i32
    %2 = arith.muli %arg0, %c1_i32 : i32
    %3 = vector.broadcast %2 : i32 to vector<1x2048xi32>
    %4 = arith.addi %3, %0 : vector<1x2048xi32>
    %c2048_i32 = arith.constant 2048 : i32
    %5 = vector.broadcast %c2048_i32 : i32 to vector<1x2048xi32>
    %6 = arith.muli %4, %5 : vector<1x2048xi32>
    %7 = arith.addi %6, %1 : vector<1x2048xi32>
    %c0 = arith.constant 0 : index
    %8 = memref.load %arg1[%c0] : memref<1xi32, #tpu.memory_space<smem>>
    %9 = vector.broadcast %8 : i32 to vector<1x2048xi32>
    %10 = arith.addi %7, %9 : vector<1x2048xi32>
    %c-1640531535_i32 = arith.constant -1640531535 : i32
    %11 = vector.broadcast %c-1640531535_i32 : i32 to vector<1x2048xi32>
    %12 = arith.muli %10, %11 : vector<1x2048xi32>
    %c16_i32 = arith.constant 16 : i32
    %13 = vector.broadcast %c16_i32 : i32 to vector<1x2048xi32>
    %14 = arith.shrui %12, %13 : vector<1x2048xi32>
    %15 = arith.xori %12, %14 : vector<1x2048xi32>
    %c-2048144789_i32 = arith.constant -2048144789 : i32
    %16 = vector.broadcast %c-2048144789_i32 : i32 to vector<1x2048xi32>
    %17 = arith.muli %15, %16 : vector<1x2048xi32>
    %c13_i32 = arith.constant 13 : i32
    %18 = vector.broadcast %c13_i32 : i32 to vector<1x2048xi32>
    %19 = arith.shrui %17, %18 : vector<1x2048xi32>
    %20 = arith.xori %17, %19 : vector<1x2048xi32>
    %c-1028477387_i32 = arith.constant -1028477387 : i32
    %21 = vector.broadcast %c-1028477387_i32 : i32 to vector<1x2048xi32>
    %22 = arith.muli %20, %21 : vector<1x2048xi32>
    %c16_i32_0 = arith.constant 16 : i32
    %23 = vector.broadcast %c16_i32_0 : i32 to vector<1x2048xi32>
    %24 = arith.shrui %22, %23 : vector<1x2048xi32>
    %25 = arith.xori %22, %24 : vector<1x2048xi32>
    %c1288490189_i32 = arith.constant 1288490189 : i32
    %26 = vector.broadcast %c1288490189_i32 : i32 to vector<1x2048xi32>
    %27 = arith.cmpi uge, %25, %26 : vector<1x2048xi32>
    %c0_1 = arith.constant 0 : index
    %c0_2 = arith.constant 0 : index
    %28 = vector.load %arg2[%c0_1, %c0_2] : memref<1x2048xf32, #tpu.memory_space<vmem>>, vector<1x2048xf32>
    %cst = arith.constant 1.42857146 : f32
    %29 = vector.broadcast %cst : f32 to vector<1x2048xf32>
    %30 = arith.mulf %28, %29 : vector<1x2048xf32>
    %cst_3 = arith.constant 0.000000e+00 : f32
    %31 = vector.broadcast %cst_3 : f32 to vector<1x2048xf32>
    %32 = arith.select %27, %30, %31 : vector<1x2048xi1>, vector<1x2048xf32>
    %c0_4 = arith.constant 0 : index
    %c0_5 = arith.constant 0 : index
    %33 = vector.load %arg3[%c0_4, %c0_5] : memref<1x2048xf32, #tpu.memory_space<vmem>>, vector<1x2048xf32>
    tpu.vector_store %arg3[%c0_4, %c0_5], %32 {strides = array<i32>} : memref<1x2048xf32, #tpu.memory_space<vmem>>, vector<1x2048xf32>,
    return
  }
  func.func @transform_0(%arg0: i32) -> i32 {
    %c0_i32 = arith.constant 0 : i32
    %c0_i32_0 = arith.constant 0 : i32
    return %c0_i32 : i32
  }
  func.func @transform_1(%arg0: i32) -> (i32, i32) {
    %c0_i32 = arith.constant 0 : i32
    %c0_i32_0 = arith.constant 0 : i32
    return %arg0, %c0_i32 : i32, i32
  }
  func.func @transform_2(%arg0: i32) -> (i32, i32) {
    %c0_i32 = arith.constant 0 : i32
    %c0_i32_0 = arith.constant 0 : i32
    return %arg0, %c0_i32 : i32, i32
  }
}

</mosaic_0001>

<llo_original>
// kernel: tpu_custom_call.1
$region0: #{tpu_custom_call.1}
  #allocation0 [shape = 'u32[]', space=smem, size = 0x4, offset = 0x4, fixed_abs, tag = 'smem constant byte address 0x4 - core index']
  #allocation1 [shape = 'u32[144,128]{1,0:T(1,128)}', space=vmem, size = 0x12000, scoped, tag = 'internal scratch']
  #allocation2 [shape = 's32[1]{0:T(128)S(6)}', space=smem, size = 0x200, scoped, tag = 'scoped memory for tpu_custom_call.1']
  %s0 = inlined_call_operand.<no memory space> [shape: s32[1], index: 0, kind: input, shape index: {}]
  %s1 = inlined_call_operand.hbm [shape: f32[1,2048], index: 1, kind: input, shape index: {}]
  %s2 = inlined_call_operand.hbm [shape: f32[1,2048], index: 2, kind: output, shape index: {}]
  %s3 = sld [smem:[#allocation0]]
  $region22: #{tpu_custom_call.1} parent=0
    _
  %s5 = ssub.s32 1, %s3
  %s6 = scalar_select 0, %s5, %s3
  %7 = sst [smem:[#allocation2]] %s0
  $region1: #{tpu_custom_call.1} parent=0
    #allocation3 [shape = 'u8[8192]{0}', space=vmem, size = 0x2000, scoped, tag = 'input window, operand 1, single buffered']
    #allocation4 [shape = 's32[1]{0}', space=sflag, size = 0x4, scoped, tag = 'scoped memory for tpu_custom_call.1']
    #allocation5 [shape = 's32[1]{0}', space=sflag, size = 0x4, scoped, tag = 'scoped memory for tpu_custom_call.1']
    #allocation6 [shape = 'u8[8192]{0}', space=vmem, size = 0x2000, scoped, tag = 'output window, operand 0, single buffered']
    %8 = vsyncpa [#allocation4], 0
    %9 = vsyncpa [#allocation5], 0
    // Predicated region
    $region2: #{tpu_custom_call.1} parent=1 // pred_check
      _
    $region3: #{tpu_custom_call.1} parent=1 // pred_check_branch
      %11 = sbr.rel (0) target = $region5
    $region4: #{tpu_custom_call.1} parent=1 // pred_region
      _
    $region5: #{tpu_custom_call.1} parent=1 // pred_fallthru
      _
    // Predicated region
    $region6: #{tpu_custom_call.1} parent=1 // pred_check
      _
    $region7: #{tpu_custom_call.1} parent=1 // pred_check_branch
      %13 = sbr.rel (0) target = $region9
    $region8: #{tpu_custom_call.1} parent=1 // pred_region
      %s15 = ssub.s32 256, 256
      %16 = vsyncadd [#allocation4], %s15
      %s18 = sshll.u32 [#allocation3], 4
      %s19 = int_to_ptr.vmem [resolvable:$true] %s18
      %21 = dma.hbm_to_vmem [thread:$0]  %s1, 256, %s19, [#allocation4]
    $region9: #{tpu_custom_call.1} parent=1 // pred_fallthru
      _
    // Predicated region
    $region10: #{tpu_custom_call.1} parent=1 // pred_check
      _
    $region11: #{tpu_custom_call.1} parent=1 // pred_check_branch
      %23 = sbr.rel (0) target = $region13
    $region12: #{tpu_custom_call.1} parent=1 // pred_region
      %24 = dma.done [#allocation4], 256
    $region13: #{tpu_custom_call.1} parent=1 // pred_fallthru
      _
    %v25 = vlaneseq
    %v26 = vshrl.u32 %v25, 7
    %v27 = vlaneseq
    %v28 = vand.u32 %v27, 127
    %v29 = vadd.s32 %v28, 128
    %v30 = vadd.s32 %v28, 256
    %v31 = vadd.s32 %v28, 384
    %v32 = vadd.s32 %v28, 512
    %v33 = vadd.s32 %v28, 640
    %v34 = vadd.s32 %v28, 768
    %v35 = vadd.s32 %v28, 896
    %v36 = vadd.s32 %v28, 1024
    %v37 = vadd.s32 %v28, 1152
    %v38 = vadd.s32 %v28, 1280
    %v39 = vadd.s32 %v28, 1408
    %v40 = vadd.s32 %v28, 1536
    %v41 = vadd.s32 %v28, 1664
    %v42 = vadd.s32 %v28, 1792
    %v43 = vadd.s32 %v28, 1920
    %v44 = vstv 0
    %v45 = vadd.s32 %v44, %v26
    %v46 = vmul.u32 %v45, 2048
    %v47 = vadd.s32 %v46, %v28
    %v48 = vadd.s32 %v46, %v29
    %v49 = vadd.s32 %v46, %v30
    %v50 = vadd.s32 %v46, %v31
    %v51 = vadd.s32 %v46, %v32
    %v52 = vadd.s32 %v46, %v33
    %v53 = vadd.s32 %v46, %v34
    %v54 = vadd.s32 %v46, %v35
    %v55 = vadd.s32 %v46, %v36
    %v56 = vadd.s32 %v46, %v37
    %v57 = vadd.s32 %v46, %v38
    %v58 = vadd.s32 %v46, %v39
    %v59 = vadd.s32 %v46, %v40
    %v60 = vadd.s32 %v46, %v41
    %v61 = vadd.s32 %v46, %v42
    %v62 = vadd.s32 %v46, %v43
    %s63 = sld [smem:[#allocation2]]
    %v64 = vstv %s63
    %v65 = vadd.s32 %v47, %v64
    %v66 = vadd.s32 %v48, %v64
    %v67 = vadd.s32 %v49, %v64
    %v68 = vadd.s32 %v50, %v64
    %v69 = vadd.s32 %v51, %v64
    %v70 = vadd.s32 %v52, %v64
    %v71 = vadd.s32 %v53, %v64
    %v72 = vadd.s32 %v54, %v64
    %v73 = vadd.s32 %v55, %v64
    %v74 = vadd.s32 %v56, %v64
    %v75 = vadd.s32 %v57, %v64
    %v76 = vadd.s32 %v58, %v64
    %v77 = vadd.s32 %v59, %v64
    %v78 = vadd.s32 %v60, %v64
    %v79 = vadd.s32 %v61, %v64
    %v80 = vadd.s32 %v62, %v64
    %v81 = vmul.u32 %v65, 2654435761
    %v82 = vmul.u32 %v66, 2654435761
    %v83 = vmul.u32 %v67, 2654435761
    %v84 = vmul.u32 %v68, 2654435761
    %v85 = vmul.u32 %v69, 2654435761
    %v86 = vmul.u32 %v70, 2654435761
    %v87 = vmul.u32 %v71, 2654435761
    %v88 = vmul.u32 %v72, 2654435761
    %v89 = vmul.u32 %v73, 2654435761
    %v90 = vmul.u32 %v74, 2654435761
    %v91 = vmul.u32 %v75, 2654435761
    %v92 = vmul.u32 %v76, 2654435761
    %v93 = vmul.u32 %v77, 2654435761
    %v94 = vmul.u32 %v78, 2654435761
    %v95 = vmul.u32 %v79, 2654435761
    %v96 = vmul.u32 %v80, 2654435761
    %v97 = vshrl.u32 %v81, 16
    %v98 = vshrl.u32 %v82, 16
    %v99 = vshrl.u32 %v83, 16
    %v100 = vshrl.u32 %v84, 16
    %v101 = vshrl.u32 %v85, 16
    %v102 = vshrl.u32 %v86, 16
    %v103 = vshrl.u32 %v87, 16
    %v104 = vshrl.u32 %v88, 16
    %v105 = vshrl.u32 %v89, 16
    %v106 = vshrl.u32 %v90, 16
    %v107 = vshrl.u32 %v91, 16
    %v108 = vshrl.u32 %v92, 16
    %v109 = vshrl.u32 %v93, 16
    %v110 = vshrl.u32 %v94, 16
    %v111 = vshrl.u32 %v95, 16
    %v112 = vshrl.u32 %v96, 16
    %v113 = vxor.u32 %v81, %v97
    %v114 = vxor.u32 %v82, %v98
    %v115 = vxor.u32 %v83, %v99
    %v116 = vxor.u32 %v84, %v100
    %v117 = vxor.u32 %v85, %v101
    %v118 = vxor.u32 %v86, %v102
    %v119 = vxor.u32 %v87, %v103
    %v120 = vxor.u32 %v88, %v104
    %v121 = vxor.u32 %v89, %v105
    %v122 = vxor.u32 %v90, %v106
    %v123 = vxor.u32 %v91, %v107
    %v124 = vxor.u32 %v92, %v108
    %v125 = vxor.u32 %v93, %v109
    %v126 = vxor.u32 %v94, %v110
    %v127 = vxor.u32 %v95, %v111
    %v128 = vxor.u32 %v96, %v112
    %v129 = vmul.u32 %v113, 2246822507
    %v130 = vmul.u32 %v114, 2246822507
    %v131 = vmul.u32 %v115, 2246822507
    %v132 = vmul.u32 %v116, 2246822507
    %v133 = vmul.u32 %v117, 2246822507
    %v134 = vmul.u32 %v118, 2246822507
    %v135 = vmul.u32 %v119, 2246822507
    %v136 = vmul.u32 %v120, 2246822507
    %v137 = vmul.u32 %v121, 2246822507
    %v138 = vmul.u32 %v122, 2246822507
    %v139 = vmul.u32 %v123, 2246822507
    %v140 = vmul.u32 %v124, 2246822507
    %v141 = vmul.u32 %v125, 2246822507
    %v142 = vmul.u32 %v126, 2246822507
    %v143 = vmul.u32 %v127, 2246822507
    %v144 = vmul.u32 %v128, 2246822507
    %v145 = vshrl.u32 %v129, 13
    %v146 = vshrl.u32 %v130, 13
    %v147 = vshrl.u32 %v131, 13
    %v148 = vshrl.u32 %v132, 13
    %v149 = vshrl.u32 %v133, 13
    %v150 = vshrl.u32 %v134, 13
    %v151 = vshrl.u32 %v135, 13
    %v152 = vshrl.u32 %v136, 13
    %v153 = vshrl.u32 %v137, 13
    %v154 = vshrl.u32 %v138, 13
    %v155 = vshrl.u32 %v139, 13
    %v156 = vshrl.u32 %v140, 13
    %v157 = vshrl.u32 %v141, 13
    %v158 = vshrl.u32 %v142, 13
    %v159 = vshrl.u32 %v143, 13
    %v160 = vshrl.u32 %v144, 13
    %v161 = vxor.u32 %v129, %v145
    %v162 = vxor.u32 %v130, %v146
    %v163 = vxor.u32 %v131, %v147
    %v164 = vxor.u32 %v132, %v148
    %v165 = vxor.u32 %v133, %v149
    %v166 = vxor.u32 %v134, %v150
    %v167 = vxor.u32 %v135, %v151
    %v168 = vxor.u32 %v136, %v152
    %v169 = vxor.u32 %v137, %v153
    %v170 = vxor.u32 %v138, %v154
    %v171 = vxor.u32 %v139, %v155
    %v172 = vxor.u32 %v140, %v156
    %v173 = vxor.u32 %v141, %v157
    %v174 = vxor.u32 %v142, %v158
    %v175 = vxor.u32 %v143, %v159
    %v176 = vxor.u32 %v144, %v160
    %v177 = vmul.u32 %v161, 3266489909
    %v178 = vmul.u32 %v162, 3266489909
    %v179 = vmul.u32 %v163, 3266489909
    %v180 = vmul.u32 %v164, 3266489909
    %v181 = vmul.u32 %v165, 3266489909
    %v182 = vmul.u32 %v166, 3266489909
    %v183 = vmul.u32 %v167, 3266489909
    %v184 = vmul.u32 %v168, 3266489909
    %v185 = vmul.u32 %v169, 3266489909
    %v186 = vmul.u32 %v170, 3266489909
    %v187 = vmul.u32 %v171, 3266489909
    %v188 = vmul.u32 %v172, 3266489909
    %v189 = vmul.u32 %v173, 3266489909
    %v190 = vmul.u32 %v174, 3266489909
    %v191 = vmul.u32 %v175, 3266489909
    %v192 = vmul.u32 %v176, 3266489909
    %v193 = vshrl.u32 %v177, 16
    %v194 = vshrl.u32 %v178, 16
    %v195 = vshrl.u32 %v179, 16
    %v196 = vshrl.u32 %v180, 16
    %v197 = vshrl.u32 %v181, 16
    %v198 = vshrl.u32 %v182, 16
    %v199 = vshrl.u32 %v183, 16
    %v200 = vshrl.u32 %v184, 16
    %v201 = vshrl.u32 %v185, 16
    %v202 = vshrl.u32 %v186, 16
    %v203 = vshrl.u32 %v187, 16
    %v204 = vshrl.u32 %v188, 16
    %v205 = vshrl.u32 %v189, 16
    %v206 = vshrl.u32 %v190, 16
    %v207 = vshrl.u32 %v191, 16
    %v208 = vshrl.u32 %v192, 16
    %v209 = vxor.u32 %v177, %v193
    %v210 = vxor.u32 %v178, %v194
    %v211 = vxor.u32 %v179, %v195
    %v212 = vxor.u32 %v180, %v196
    %v213 = vxor.u32 %v181, %v197
    %v214 = vxor.u32 %v182, %v198
    %v215 = vxor.u32 %v183, %v199
    %v216 = vxor.u32 %v184, %v200
    %v217 = vxor.u32 %v185, %v201
    %v218 = vxor.u32 %v186, %v202
    %v219 = vxor.u32 %v187, %v203
    %v220 = vxor.u32 %v188, %v204
    %v221 = vxor.u32 %v189, %v205
    %v222 = vxor.u32 %v190, %v206
    %v223 = vxor.u32 %v191, %v207
    %v224 = vxor.u32 %v192, %v208
    %vm225 = vcmp.ge.u32.totalorder %v209, 1288490189
    %vm226 = vcmp.ge.u32.totalorder %v210, 1288490189
    %vm227 = vcmp.ge.u32.totalorder %v211, 1288490189
    %vm228 = vcmp.ge.u32.totalorder %v212, 1288490189
    %vm229 = vcmp.ge.u32.totalorder %v213, 1288490189
    %vm230 = vcmp.ge.u32.totalorder %v214, 1288490189
    %vm231 = vcmp.ge.u32.totalorder %v215, 1288490189
    %vm232 = vcmp.ge.u32.totalorder %v216, 1288490189
    %vm233 = vcmp.ge.u32.totalorder %v217, 1288490189
    %vm234 = vcmp.ge.u32.totalorder %v218, 1288490189
    %vm235 = vcmp.ge.u32.totalorder %v219, 1288490189
    %vm236 = vcmp.ge.u32.totalorder %v220, 1288490189
    %vm237 = vcmp.ge.u32.totalorder %v221, 1288490189
    %vm238 = vcmp.ge.u32.totalorder %v222, 1288490189
    %vm239 = vcmp.ge.u32.totalorder %v223, 1288490189
    %vm240 = vcmp.ge.u32.totalorder %v224, 1288490189
    %v241 = vld [vmem:[#allocation3] sm:$0xff]
    %v242 = vld [vmem:[#allocation3 + $0x8] sm:$0xff]
    %v243 = vmul.f32 %v241, 1.4285715
    %v244 = vmul.f32 %v242, 1.4285715
    %v247 = vlaneseq
    %v248 = vshrl.u32 %v247, 7
    %v249 = vsub.s32 0, %v248
    %v250 = vrot.slane %v243, %v249
    %v251 = vlaneseq
    %v252 = vshrl.u32 %v251, 7
    %v253 = vsub.s32 1, %v252
    %v254 = vrot.slane %v243, %v253
    %v255 = vlaneseq
    %v256 = vshrl.u32 %v255, 7
    %v257 = vsub.s32 2, %v256
    %v258 = vrot.slane %v243, %v257
    %v259 = vlaneseq
    %v260 = vshrl.u32 %v259, 7
    %v261 = vsub.s32 3, %v260
    %v262 = vrot.slane %v243, %v261
    %v263 = vlaneseq
    %v264 = vshrl.u32 %v263, 7
    %v265 = vsub.s32 4, %v264
    %v266 = vrot.slane %v243, %v265
    %v267 = vlaneseq
    %v268 = vshrl.u32 %v267, 7
    %v269 = vsub.s32 5, %v268
    %v270 = vrot.slane %v243, %v269
    %v271 = vlaneseq
    %v272 = vshrl.u32 %v271, 7
    %v273 = vsub.s32 6, %v272
    %v274 = vrot.slane %v243, %v273
    %v275 = vlaneseq
    %v276 = vshrl.u32 %v275, 7
    %v277 = vsub.s32 7, %v276
    %v278 = vrot.slane %v243, %v277
    %v279 = vlaneseq
    %v280 = vshrl.u32 %v279, 7
    %v281 = vsub.s32 0, %v280
    %v282 = vrot.slane %v244, %v281
    %v283 = vlaneseq
    %v284 = vshrl.u32 %v283, 7
    %v285 = vsub.s32 1, %v284
    %v286 = vrot.slane %v244, %v285
    %v287 = vlaneseq
    %v288 = vshrl.u32 %v287, 7
    %v289 = vsub.s32 2, %v288
    %v290 = vrot.slane %v244, %v289
    %v291 = vlaneseq
    %v292 = vshrl.u32 %v291, 7
    %v293 = vsub.s32 3, %v292
    %v294 = vrot.slane %v244, %v293
    %v295 = vlaneseq
    %v296 = vshrl.u32 %v295, 7
    %v297 = vsub.s32 4, %v296
    %v298 = vrot.slane %v244, %v297
    %v299 = vlaneseq
    %v300 = vshrl.u32 %v299, 7
    %v301 = vsub.s32 5, %v300
    %v302 = vrot.slane %v244, %v301
    %v303 = vlaneseq
    %v304 = vshrl.u32 %v303, 7
    %v305 = vsub.s32 6, %v304
    %v306 = vrot.slane %v244, %v305
    %v307 = vlaneseq
    %v308 = vshrl.u32 %v307, 7
    %v309 = vsub.s32 7, %v308
    %v310 = vrot.slane %v244, %v309
    %v327 = vsel %vm225, %v250, 0.0
    %v328 = vsel %vm226, %v254, 0.0
    %v329 = vsel %vm227, %v258, 0.0
    %v330 = vsel %vm228, %v262, 0.0
    %v331 = vsel %vm229, %v266, 0.0
    %v332 = vsel %vm230, %v270, 0.0
    %v333 = vsel %vm231, %v274, 0.0
    %v334 = vsel %vm232, %v278, 0.0
    %v335 = vsel %vm233, %v282, 0.0
    %v336 = vsel %vm234, %v286, 0.0
    %v337 = vsel %vm235, %v290, 0.0
    %v338 = vsel %vm236, %v294, 0.0
    %v339 = vsel %vm237, %v298, 0.0
    %v340 = vsel %vm238, %v302, 0.0
    %v341 = vsel %vm239, %v306, 0.0
    %v342 = vsel %vm240, %v310, 0.0
    %v359 = vcombine.low %v327, %v328
    %v360 = vcombine.low %v329, %v330
    %v361 = vcombine.low %v331, %v332
    %v362 = vcombine.low %v333, %v334
    %v364 = vunpack.c.l.s4 1966171168
    %v365 = vunpack.c.0.s8 %v364
    %v366 = vlaneseq
    %v367 = vshrl.u32 %v366, 7
    %v368 = vsub.s32 %v365, %v367
    %v369 = vrot.slane %v359, %v368
    %v371 = vunpack.c.l.s4 1966171168
    %v372 = vunpack.c.0.s8 %v371
    %v373 = vlaneseq
    %v374 = vshrl.u32 %v373, 7
    %v375 = vsub.s32 %v372, %v374
    %v376 = vrot.slane %v360, %v375
    %v378 = vunpack.c.l.s4 1966171168
    %v379 = vunpack.c.0.s8 %v378
    %v380 = vlaneseq
    %v381 = vshrl.u32 %v380, 7
    %v382 = vsub.s32 %v379, %v381
    %v383 = vrot.slane %v361, %v382
    %v385 = vunpack.c.l.s4 1966171168
    %v386 = vunpack.c.0.s8 %v385
    %v387 = vlaneseq
    %v388 = vshrl.u32 %v387, 7
    %v389 = vsub.s32 %v386, %v388
    %v390 = vrot.slane %v362, %v389
    %v391 = vcombine.low %v369, %v376
    %v392 = vcombine.low %v383, %v390
    %v394 = vunpack.c.l.s4 1966171168
    %v395 = vunpack.c.0.s8 %v394
    %v396 = vlaneseq
    %v397 = vshrl.u32 %v396, 7
    %v398 = vsub.s32 %v395, %v397
    %v399 = vrot.slane %v391, %v398
    %v401 = vunpack.c.l.s4 1966171168
    %v402 = vunpack.c.0.s8 %v401
    %v403 = vlaneseq
    %v404 = vshrl.u32 %v403, 7
    %v405 = vsub.s32 %v402, %v404
    %v406 = vrot.slane %v392, %v405
    %v407 = vcombine.low %v399, %v406
    %v408 = vcombine.low %v335, %v336
    %v409 = vcombine.low %v337, %v338
    %v410 = vcombine.low %v339, %v340
    %v411 = vcombine.low %v341, %v342
    %v413 = vunpack.c.l.s4 1966171168
    %v414 = vunpack.c.0.s8 %v413
    %v415 = vlaneseq
    %v416 = vshrl.u32 %v415, 7
    %v417 = vsub.s32 %v414, %v416
    %v418 = vrot.slane %v408, %v417
    %v420 = vunpack.c.l.s4 1966171168
    %v421 = vunpack.c.0.s8 %v420
    %v422 = vlaneseq
    %v423 = vshrl.u32 %v422, 7
    %v424 = vsub.s32 %v421, %v423
    %v425 = vrot.slane %v409, %v424
    %v427 = vunpack.c.l.s4 1966171168
    %v428 = vunpack.c.0.s8 %v427
    %v429 = vlaneseq
    %v430 = vshrl.u32 %v429, 7
    %v431 = vsub.s32 %v428, %v430
    %v432 = vrot.slane %v410, %v431
    %v434 = vunpack.c.l.s4 1966171168
    %v435 = vunpack.c.0.s8 %v434
    %v436 = vlaneseq
    %v437 = vshrl.u32 %v436, 7
    %v438 = vsub.s32 %v435, %v437
    %v439 = vrot.slane %v411, %v438
    %v440 = vcombine.low %v418, %v425
    %v441 = vcombine.low %v432, %v439
    %v443 = vunpack.c.l.s4 1966171168
    %v444 = vunpack.c.0.s8 %v443
    %v445 = vlaneseq
    %v446 = vshrl.u32 %v445, 7
    %v447 = vsub.s32 %v444, %v446
    %v448 = vrot.slane %v440, %v447
    %v450 = vunpack.c.l.s4 1966171168
    %v451 = vunpack.c.0.s8 %v450
    %v452 = vlaneseq
    %v453 = vshrl.u32 %v452, 7
    %v454 = vsub.s32 %v451, %v453
    %v455 = vrot.slane %v441, %v454
    %v456 = vcombine.low %v448, %v455
    %459 = vst [vmem:[#allocation6] sm:$0xff] %v407
    %460 = vst [vmem:[#allocation6 + $0x8] sm:$0xff] %v456
    // Predicated region
    $region14: #{tpu_custom_call.1} parent=1 // pred_check
      _
    $region15: #{tpu_custom_call.1} parent=1 // pred_check_branch
      %462 = sbr.rel (0) target = $region17
    $region16: #{tpu_custom_call.1} parent=1 // pred_region
      %s464 = ssub.s32 256, 256
      %465 = vsyncadd [#allocation5], %s464
      %s467 = sshll.u32 [#allocation6], 4
      %s468 = int_to_ptr.vmem [resolvable:$true] %s467
      %470 = dma.vmem_to_hbm [thread:$0]  %s468, 256, %s2, [#allocation5]
    $region17: #{tpu_custom_call.1} parent=1 // pred_fallthru
      _
    // Predicated region
    $region18: #{tpu_custom_call.1} parent=1 // pred_check
      _
    $region19: #{tpu_custom_call.1} parent=1 // pred_check_branch
      %472 = sbr.rel (0) target = $region21
    $region20: #{tpu_custom_call.1} parent=1 // pred_region
      %473 = dma.done [#allocation5], 256
    $region21: #{tpu_custom_call.1} parent=1 // pred_fallthru
      _
    %474 = vsyncpa [#allocation4], 1
    %475 = vsyncpa [#allocation5], 1

</llo_original>
